<compile_context>
chip_gen: v7x
topology: tpu7x:2x2x1
jax: 0.10.0
libtpu: 0.0.40
codegen_flags: <defaults>
</compile_context>

<pallas_src>
import functools

import jax
import jax.numpy as jnp
from jax.experimental import pallas as pl
from jax.experimental.pallas import tpu as pltpu


def _sigmoid(x):
    # EUP-friendly sigmoid: a single tanh instead of exp + divide.
    return 0.5 * (jnp.tanh(0.5 * x) + 1.0)


def ml2_batch_kernel(gu_ref, rv_ref, wt_ref, s_ref, idx_ref, out_ref):
    """Per-batch-tile path; batch lives on the LANE axis everywhere.

    gu_ref : (r2*r3, n_u) f32 resident:  GU = Gt @ U.weight^T,
                                          Gt[j*r3+k, i] = core G[i, j, k]
    rv_ref : (r2*r3, n_v) f32 resident:  RV[j*r3+k, n] = V.weight[n, j]
    wt_ref : (r3,   n_w)  f32 resident:  W.weight^T
    s_ref  : (r3, r2*r3)  f32 resident:  tile(I_r3, (1, r2)) grouped j-sum
    idx_ref: (3, TB) int32 tile: rows = [u_idx, v_idx, w_idx] (lane-major)
    out_ref: (1, TB) f32 lane-dense predictions
    """
    f32 = jnp.float32
    idx = idx_ref[...]
    n_u = gu_ref.shape[1]
    n_v = rv_ref.shape[1]
    n_w = wt_ref.shape[1]
    tb = idx.shape[1]

    # In-kernel embedding "gather" as one-hot selection (tables resident in
    # VMEM; only the int32 indices stream from HBM).
    oh_u = (jax.lax.broadcasted_iota(jnp.int32, (n_u, tb), 0)
            == idx[0:1, :]).astype(f32)
    oh_v = (jax.lax.broadcasted_iota(jnp.int32, (n_v, tb), 0)
            == idx[1:2, :]).astype(f32)
    oh_w = (jax.lax.broadcasted_iota(jnp.int32, (n_w, tb), 0)
            == idx[2:3, :]).astype(f32)

    # x^T[j*r3+k, b] = sigmoid(sum_i G[i,j,k] * U[u_idx[b], i])   -- 1 matmul
    xT = _sigmoid(jnp.dot(gu_ref[...], oh_u, preferred_element_type=f32))
    # vrep[j*r3+k, b] = V[v_idx[b], j]                            -- 1 matmul
    vrep = jnp.dot(rv_ref[...], oh_v, preferred_element_type=f32)
    # m^T[k, b] = sigmoid(sum_j v[b,j] * x[b, j*r3+k])            -- 1 matmul
    mT = _sigmoid(jnp.dot(s_ref[...], vrep * xT, preferred_element_type=f32))
    # w^T[k, b] = W[w_idx[b], k];  pred[b] = sum_k w[b,k] * m[b,k]
    wT = jnp.dot(wt_ref[...], oh_w, preferred_element_type=f32)
    out_ref[...] = jnp.sum(wT * mT, axis=0, keepdims=True)


@functools.partial(jax.jit, static_argnames=("batch_tile",))
def ml2_forward(u_idx, v_idx, w_idx, params, batch_tile=4096):
    U, V, W, U1, V1, W1, G1 = params
    r1, _ = U1.shape
    r2, _ = V1.shape
    r3, _ = W1.shape
    n_u = U.shape[0]
    n_v = V.shape[0]
    n_w = W.shape[0]
    f32 = jnp.float32

    # ---- batch-independent glue (tiny; XLA fuses it; no extra dispatch) ----
    res = jax.nn.sigmoid(jnp.einsum('ia,abc->ibc', U1.astype(f32), G1.astype(f32)))
    res = jax.nn.sigmoid(jnp.einsum('jb,ibc->ijc', V1.astype(f32), res))
    G = jax.nn.sigmoid(jnp.einsum('kc,ijc->ijk', W1.astype(f32), res))
    Gt = G.reshape(r1, r2 * r3).T                      # Gt[j*r3+k, i] = G[i,j,k]

    GU = jnp.dot(Gt, U.astype(f32).T)                  # (r2*r3, n_u)
    RV = jnp.repeat(V.astype(f32).T, r3, axis=0)       # (r2*r3, n_v)
    WT = W.astype(f32).T                               # (r3, n_w)
    Sm = jnp.tile(jnp.eye(r3, dtype=f32), (1, r2))     # (r3, r2*r3)

    # ---- pack the only streaming operand: (3, Bp) int32 indices ------------
    B = int(u_idx.shape[0])
    idx = jnp.stack([u_idx, v_idx, w_idx]).astype(jnp.int32)   # (3, B)

    LANE = 128
    Bp0 = int(pl.cdiv(B, LANE)) * LANE          # lane-dense (unmasked vld/vst)
    if Bp0 <= 512:
        TB = Bp0                                # single tile for small B
    else:
        # >= 2 tiles so both v7x TensorCores get work; large TB (up to
        # batch_tile) amortizes the ~0.35 us per-grid-step overhead.
        TB = min(int(batch_tile), int(pl.cdiv(Bp0, 2 * LANE)) * LANE)
    Bp = int(pl.cdiv(Bp0, TB)) * TB
    if Bp != B:
        idx = jnp.pad(idx, ((0, 0), (0, Bp - B)))   # pad with index 0 (sliced off)
    grid = (Bp // TB,)

    out = pl.pallas_call(
        ml2_batch_kernel,
        out_shape=jax.ShapeDtypeStruct((1, Bp), f32),
        grid=grid,
        in_specs=[
            pl.BlockSpec((r2 * r3, n_u), lambda i: (0, 0)),   # GU (resident)
            pl.BlockSpec((r2 * r3, n_v), lambda i: (0, 0)),   # RV (resident)
            pl.BlockSpec((r3, n_w), lambda i: (0, 0)),        # W^T (resident)
            pl.BlockSpec((r3, r2 * r3), lambda i: (0, 0)),    # S (resident)
            pl.BlockSpec((3, TB), lambda i: (0, i)),          # idx tile (streamed)
        ],
        out_specs=pl.BlockSpec((1, TB), lambda i: (0, i)),    # lane-dense output
        compiler_params=pltpu.CompilerParams(
            dimension_semantics=("parallel",)),               # v7x megacore split
    )(GU, RV, WT, Sm, idx)

    return out[0, :B]                 # torch.squeeze -> (B,)


def ml2_reference(u_idx, v_idx, w_idx, params):
    """Pure-JAX reference mirroring the PyTorch forward."""
    U, V, W, U1, V1, W1, G1 = params
    r1, _ = U1.shape
    r2, _ = V1.shape
    r3, _ = W1.shape
    u = U[u_idx]
    v = V[v_idx]
    w = W[w_idx]
    res = jax.nn.sigmoid(jnp.einsum('ia,abc->ibc', U1, G1))
    res = jax.nn.sigmoid(jnp.einsum('jb,ibc->ijc', V1, res))
    G = jax.nn.sigmoid(jnp.einsum('kc,ijc->ijk', W1, res))
    x = jax.nn.sigmoid(u @ G.reshape(r1, r2 * r3)).reshape(-1, r2, r3)
    gm = jax.nn.sigmoid(jnp.einsum('bj,bjk->bk', v, x))
    return jnp.sum(w * gm, axis=1)


def xavier_normal(key, shape):
    # torch.nn.init.xavier_normal_ for a 2D (fan_out, fan_in) weight
    std = (2.0 / (shape[0] + shape[1])) ** 0.5
    return std * jax.random.normal(key, shape, dtype=jnp.float32)


if __name__ == "__main__":
    data_shape = (16, 16, 16)
    core_shape = (8, 8, 8)      # (r1, r2, r3)
    core2_shape = (4, 4, 4)     # (c1, c2, c3)

    r1, r2, r3 = core_shape
    c1, c2, c3 = core2_shape

    key = jax.random.PRNGKey(0)
    keys = jax.random.split(key, 7)

    U1 = xavier_normal(keys[0], (r1, c1))
    V1 = xavier_normal(keys[1], (r2, c2))
    W1 = xavier_normal(keys[2], (r3, c3))
    G1 = jax.random.uniform(keys[3], (c1, c2, c3),
                            minval=-1.0, maxval=1.0, dtype=jnp.float32)
    U = xavier_normal(keys[4], (data_shape[0], r1))
    V = xavier_normal(keys[5], (data_shape[1], r2))
    W = xavier_normal(keys[6], (data_shape[2], r3))
    params = (U, V, W, U1, V1, W1, G1)

    # Cover: tiny B padded to one 128-lane tile (B=8), single padded tile
    # (B=300), exact single tile (B=512), and multi-tile with padded tail
    # (B=2000 -> 2 tiles of 1024).
    for B in (8, 300, 512, 2000):
        ikeys = jax.random.split(jax.random.PRNGKey(B), 3)
        u_idx = jax.random.randint(ikeys[0], (B,), 0, data_shape[0])
        v_idx = jax.random.randint(ikeys[1], (B,), 0, data_shape[1])
        w_idx = jax.random.randint(ikeys[2], (B,), 0, data_shape[2])

        pred = jax.block_until_ready(ml2_forward(u_idx, v_idx, w_idx, params))
        ref = jax.block_until_ready(ml2_reference(u_idx, v_idx, w_idx, params))

        assert pred.shape == (B,), (B, pred.shape)
        assert jnp.allclose(pred, ref, rtol=1e-4, atol=1e-5), (B, pred, ref)

    print("KERNEL_OK")
</pallas_src>

<mosaic_0001>
module attributes {stable_mosaic.version = 11 : i64} {
  func.func @ml2_batch_kernel(%arg0: i32, %arg1: memref<64x16xf32, #tpu.memory_space<vmem>>, %arg2: memref<64x16xf32, #tpu.memory_space<vmem>>, %arg3: memref<8x16xf32, #tpu.memory_space<vmem>>, %arg4: memref<8x64xf32, #tpu.memory_space<vmem>>, %arg5: memref<3x128xi32, #tpu.memory_space<vmem>>, %arg6: memref<1x128xf32, #tpu.memory_space<vmem>>) attributes {dimension_semantics = [#tpu.dimension_semantics<parallel>], iteration_bounds = array<i64: 1>, scalar_prefetch = 0 : i64, scratch_operands = 0 : i64, tpu.core_type = #tpu.core_type<tc>, window_params = [{pipeline_mode = #tpu.pipeline_mode<synchronous>, transform_indices = @transform_0, window_bounds = array<i64: 64, 16>}, {pipeline_mode = #tpu.pipeline_mode<synchronous>, transform_indices = @transform_1, window_bounds = array<i64: 64, 16>}, {pipeline_mode = #tpu.pipeline_mode<synchronous>, transform_indices = @transform_2, window_bounds = array<i64: 8, 16>}, {pipeline_mode = #tpu.pipeline_mode<synchronous>, transform_indices = @transform_3, window_bounds = array<i64: 8, 64>}, {transform_indices = @transform_4, window_bounds = array<i64: 3, 128>}, {transform_indices = @transform_5, window_bounds = array<i64: 1, 128>}]} {
    %c0 = arith.constant 0 : index
    %c0_0 = arith.constant 0 : index
    %0 = vector.load %arg5[%c0, %c0_0] : memref<3x128xi32, #tpu.memory_space<vmem>>, vector<3x128xi32>
    %1 = tpu.iota {dimensions = array<i32: 0>} : vector<16x128xi32>
    %2 = vector.extract_strided_slice %0 {offsets = [0, 0], sizes = [1, 128], strides = [1, 1]} : vector<3x128xi32> to vector<1x128xi32>
    %3 = vector.broadcast %2 : vector<1x128xi32> to vector<16x128xi32>
    %4 = arith.cmpi eq, %1, %3 : vector<16x128xi32>
    %5 = arith.extui %4 : vector<16x128xi1> to vector<16x128xi32>
    %6 = arith.sitofp %5 : vector<16x128xi32> to vector<16x128xf32>
    %7 = tpu.iota {dimensions = array<i32: 0>} : vector<16x128xi32>
    %8 = vector.extract_strided_slice %0 {offsets = [1, 0], sizes = [1, 128], strides = [1, 1]} : vector<3x128xi32> to vector<1x128xi32>
    %9 = vector.broadcast %8 : vector<1x128xi32> to vector<16x128xi32>
    %10 = arith.cmpi eq, %7, %9 : vector<16x128xi32>
    %11 = arith.extui %10 : vector<16x128xi1> to vector<16x128xi32>
    %12 = arith.sitofp %11 : vector<16x128xi32> to vector<16x128xf32>
    %13 = tpu.iota {dimensions = array<i32: 0>} : vector<16x128xi32>
    %14 = vector.extract_strided_slice %0 {offsets = [2, 0], sizes = [1, 128], strides = [1, 1]} : vector<3x128xi32> to vector<1x128xi32>
    %15 = vector.broadcast %14 : vector<1x128xi32> to vector<16x128xi32>
    %16 = arith.cmpi eq, %13, %15 : vector<16x128xi32>
    %17 = arith.extui %16 : vector<16x128xi1> to vector<16x128xi32>
    %18 = arith.sitofp %17 : vector<16x128xi32> to vector<16x128xf32>
    %c0_1 = arith.constant 0 : index
    %c0_2 = arith.constant 0 : index
    %19 = vector.load %arg1[%c0_1, %c0_2] : memref<64x16xf32, #tpu.memory_space<vmem>>, vector<64x16xf32>
    %cst = arith.constant dense<0.000000e+00> : vector<64x128xf32>
    %20 = tpu.matmul %19, %6, %cst {dimension_numbers = #tpu.dot_dimension_numbers<[1], [0], [0], [1], [0, 0, 1, 1], [], []>} : vector<64x16xf32>, vector<16x128xf32>, vector<64x128xf32> -> vector<64x128xf32>
    %cst_3 = arith.constant 5.000000e-01 : f32
    %21 = vector.broadcast %cst_3 : f32 to vector<64x128xf32>
    %22 = arith.mulf %21, %20 : vector<64x128xf32>
    %23 = math.tanh %22 : vector<64x128xf32>
    %cst_4 = arith.constant 1.000000e+00 : f32
    %24 = vector.broadcast %cst_4 : f32 to vector<64x128xf32>
    %25 = arith.addf %23, %24 : vector<64x128xf32>
    %cst_5 = arith.constant 5.000000e-01 : f32
    %26 = vector.broadcast %cst_5 : f32 to vector<64x128xf32>
    %27 = arith.mulf %26, %25 : vector<64x128xf32>
    %c0_6 = arith.constant 0 : index
    %c0_7 = arith.constant 0 : index
    %28 = vector.load %arg2[%c0_6, %c0_7] : memref<64x16xf32, #tpu.memory_space<vmem>>, vector<64x16xf32>
    %cst_8 = arith.constant dense<0.000000e+00> : vector<64x128xf32>
    %29 = tpu.matmul %28, %12, %cst_8 {dimension_numbers = #tpu.dot_dimension_numbers<[1], [0], [0], [1], [0, 0, 1, 1], [], []>} : vector<64x16xf32>, vector<16x128xf32>, vector<64x128xf32> -> vector<64x128xf32>
    %c0_9 = arith.constant 0 : index
    %c0_10 = arith.constant 0 : index
    %30 = vector.load %arg4[%c0_9, %c0_10] : memref<8x64xf32, #tpu.memory_space<vmem>>, vector<8x64xf32>
    %31 = arith.mulf %29, %27 : vector<64x128xf32>
    %cst_11 = arith.constant dense<0.000000e+00> : vector<8x128xf32>
    %32 = tpu.matmul %30, %31, %cst_11 {dimension_numbers = #tpu.dot_dimension_numbers<[1], [0], [0], [1], [0, 0, 1, 1], [], []>} : vector<8x64xf32>, vector<64x128xf32>, vector<8x128xf32> -> vector<8x128xf32>
    %cst_12 = arith.constant 5.000000e-01 : f32
    %33 = vector.broadcast %cst_12 : f32 to vector<8x128xf32>
    %34 = arith.mulf %33, %32 : vector<8x128xf32>
    %35 = math.tanh %34 : vector<8x128xf32>
    %cst_13 = arith.constant 1.000000e+00 : f32
    %36 = vector.broadcast %cst_13 : f32 to vector<8x128xf32>
    %37 = arith.addf %35, %36 : vector<8x128xf32>
    %cst_14 = arith.constant 5.000000e-01 : f32
    %38 = vector.broadcast %cst_14 : f32 to vector<8x128xf32>
    %39 = arith.mulf %38, %37 : vector<8x128xf32>
    %c0_15 = arith.constant 0 : index
    %c0_16 = arith.constant 0 : index
    %40 = vector.load %arg3[%c0_15, %c0_16] : memref<8x16xf32, #tpu.memory_space<vmem>>, vector<8x16xf32>
    %cst_17 = arith.constant dense<0.000000e+00> : vector<8x128xf32>
    %41 = tpu.matmul %40, %18, %cst_17 {dimension_numbers = #tpu.dot_dimension_numbers<[1], [0], [0], [1], [0, 0, 1, 1], [], []>} : vector<8x16xf32>, vector<16x128xf32>, vector<8x128xf32> -> vector<8x128xf32>
    %42 = arith.mulf %41, %39 : vector<8x128xf32>
    %cst_18 = arith.constant dense<0.000000e+00> : vector<128xf32>
    %43 = vector.multi_reduction <add>, %42, %cst_18 [0] : vector<8x128xf32> to vector<128xf32>
    %44 = vector.shape_cast %43 : vector<128xf32> to vector<1x128xf32>
    %c0_19 = arith.constant 0 : index
    %c0_20 = arith.constant 0 : index
    %45 = vector.load %arg6[%c0_19, %c0_20] : memref<1x128xf32, #tpu.memory_space<vmem>>, vector<1x128xf32>
    tpu.vector_store %arg6[%c0_19, %c0_20], %44 {strides = array<i32>} : memref<1x128xf32, #tpu.memory_space<vmem>>, vector<1x128xf32>,
    return
  }
  func.func @transform_0(%arg0: i32) -> (i32, i32) {
    %c0_i32 = arith.constant 0 : i32
    %c0_i32_0 = arith.constant 0 : i32
    %c0_i32_1 = arith.constant 0 : i32
    return %c0_i32, %c0_i32_0 : i32, i32
  }
  func.func @transform_1(%arg0: i32) -> (i32, i32) {
    %c0_i32 = arith.constant 0 : i32
    %c0_i32_0 = arith.constant 0 : i32
    %c0_i32_1 = arith.constant 0 : i32
    return %c0_i32, %c0_i32_0 : i32, i32
  }
  func.func @transform_2(%arg0: i32) -> (i32, i32) {
    %c0_i32 = arith.constant 0 : i32
    %c0_i32_0 = arith.constant 0 : i32
    %c0_i32_1 = arith.constant 0 : i32
    return %c0_i32, %c0_i32_0 : i32, i32
  }
  func.func @transform_3(%arg0: i32) -> (i32, i32) {
    %c0_i32 = arith.constant 0 : i32
    %c0_i32_0 = arith.constant 0 : i32
    %c0_i32_1 = arith.constant 0 : i32
    return %c0_i32, %c0_i32_0 : i32, i32
  }
  func.func @transform_4(%arg0: i32) -> (i32, i32) {
    %c0_i32 = arith.constant 0 : i32
    %c0_i32_0 = arith.constant 0 : i32
    return %c0_i32, %arg0 : i32, i32
  }
  func.func @transform_5(%arg0: i32) -> (i32, i32) {
    %c0_i32 = arith.constant 0 : i32
    %c0_i32_0 = arith.constant 0 : i32
    return %c0_i32, %arg0 : i32, i32
  }
}

</mosaic_0001>

<llo_original>
// kernel: tile.9
$region0: #{tile.9}
  %s0 = inlined_call_operand.vmem [shape: f32[8,8,8], index: 0, kind: input, shape index: {}]
  %s1 = inlined_call_operand.vmem [shape: f32[8,64], index: 1, kind: output, shape index: {}]
  %v2 = vld [vmem:[%s0] ss:$8 sm:$0xf]
  %v3 = vld [vmem:[%s0] ss:$8 sm:$0xf0]
  %vm4 = vcmask 1047556
  %v5 = vsel %vm4, %v3, %v2
  %vm6 = vcmask 64512
  %7 = vst.msk [vmem:[%s1] sm:$0xff] %vm6, %v5
  %s8 = scalar_lea.vmem %s0, 7
  %v9 = vld [vmem:[%s8] ss:$8 sm:$0xf]
  %s10 = scalar_lea.vmem %s0, 7
  %v11 = vld [vmem:[%s10] ss:$8 sm:$0xf0]
  %vm12 = vcmask 1047556
  %v13 = vsel %vm12, %v11, %v9
  %14 = vrot.lane.b32.xlu0 %v13, 56
  %v15 = vpop.permute.xlu0 %14
  %vm16 = vcmask 523712
  %17 = vst.msk [vmem:[%s1] sm:$0xff] %vm16, %v15
  %s18 = scalar_lea.vmem %s0, 6
  %v19 = vld [vmem:[%s18] ss:$8 sm:$0xf]
  %s20 = scalar_lea.vmem %s0, 6
  %v21 = vld [vmem:[%s20] ss:$8 sm:$0xf0]
  %vm22 = vcmask 1047556
  %v23 = vsel %vm22, %v21, %v19
  %24 = vrot.lane.b32.xlu0 %v23, 48
  %v25 = vpop.permute.xlu0 %24
  %vm26 = vcmask 458112
  %27 = vst.msk [vmem:[%s1] sm:$0xff] %vm26, %v25
  %s28 = scalar_lea.vmem %s0, 5
  %v29 = vld [vmem:[%s28] ss:$8 sm:$0xf]
  %s30 = scalar_lea.vmem %s0, 5
  %v31 = vld [vmem:[%s30] ss:$8 sm:$0xf0]
  %vm32 = vcmask 1047556
  %v33 = vsel %vm32, %v31, %v29
  %34 = vrot.lane.b32.xlu0 %v33, 40
  %v35 = vpop.permute.xlu0 %34
  %vm36 = vcmask 392512
  %37 = vst.msk [vmem:[%s1] sm:$0xff] %vm36, %v35
  %s38 = scalar_lea.vmem %s0, 4
  %v39 = vld [vmem:[%s38] ss:$8 sm:$0xf]
  %s40 = scalar_lea.vmem %s0, 4
  %v41 = vld [vmem:[%s40] ss:$8 sm:$0xf0]
  %vm42 = vcmask 1047556
  %v43 = vsel %vm42, %v41, %v39
  %44 = vrot.lane.b32.xlu0 %v43, 32
  %v45 = vpop.permute.xlu0 %44
  %vm46 = vcmask 326912
  %47 = vst.msk [vmem:[%s1] sm:$0xff] %vm46, %v45
  %s48 = scalar_lea.vmem %s0, 3
  %v49 = vld [vmem:[%s48] ss:$8 sm:$0xf]
  %s50 = scalar_lea.vmem %s0, 3
  %v51 = vld [vmem:[%s50] ss:$8 sm:$0xf0]
  %vm52 = vcmask 1047556
  %v53 = vsel %vm52, %v51, %v49
  %54 = vrot.lane.b32.xlu0 %v53, 24
  %v55 = vpop.permute.xlu0 %54
  %vm56 = vcmask 261312
  %57 = vst.msk [vmem:[%s1] sm:$0xff] %vm56, %v55
  %s58 = scalar_lea.vmem %s0, 2
  %v59 = vld [vmem:[%s58] ss:$8 sm:$0xf]
  %s60 = scalar_lea.vmem %s0, 2
  %v61 = vld [vmem:[%s60] ss:$8 sm:$0xf0]
  %vm62 = vcmask 1047556
  %v63 = vsel %vm62, %v61, %v59
  %64 = vrot.lane.b32.xlu0 %v63, 16
  %v65 = vpop.permute.xlu0 %64
  %vm66 = vcmask 195712
  %67 = vst.msk [vmem:[%s1] sm:$0xff] %vm66, %v65
  %s68 = scalar_lea.vmem %s0, 1
  %v69 = vld [vmem:[%s68] ss:$8 sm:$0xf]
  %s70 = scalar_lea.vmem %s0, 1
  %v71 = vld [vmem:[%s70] ss:$8 sm:$0xf0]
  %vm72 = vcmask 1047556
  %v73 = vsel %vm72, %v71, %v69
  %74 = vrot.lane.b32.xlu0 %v73, 8
  %v75 = vpop.permute.xlu0 %74
  %vm76 = vcmask 130112
  %77 = vst.msk [vmem:[%s1] sm:$0xff] %vm76, %v75

// kernel: ml2_forward.1
$region0: #{ml2_forward.1}
  #allocation0 [shape = 'u32[]', space=smem, size = 0x4, offset = 0x4, fixed_abs, tag = 'smem constant byte address 0x4 - core index']
  #allocation1 [shape = 'u32[144,128]{1,0:T(1,128)}', space=vmem, size = 0x12000, scoped, tag = 'internal scratch']
  %s0 = inlined_call_operand.vmem [shape: f32[64,16], index: 0, kind: input, shape index: {}]
  %s1 = inlined_call_operand.vmem [shape: f32[64,16], index: 1, kind: input, shape index: {}]
  %s2 = inlined_call_operand.vmem [shape: f32[8,16], index: 2, kind: input, shape index: {}]
  %s3 = inlined_call_operand.vmem [shape: f32[8,64], index: 3, kind: input, shape index: {}]
  %s4 = inlined_call_operand.vmem [shape: s32[3,128], index: 4, kind: input, shape index: {}]
  %s5 = inlined_call_operand.vmem [shape: f32[1,128], index: 5, kind: output, shape index: {}]
  %s6 = sld [smem:[#allocation0]]
  $region30: #{ml2_forward.1} parent=0
    _
  %s8 = ssub.s32 1, %s6
  %s9 = scalar_select 0, %s8, %s6
  // Predicated region
  $region2: #{ml2_forward.1} parent=0 // pred_check
    _
  $region3: #{ml2_forward.1} parent=0 // pred_check_branch
    %11 = sbr.rel (0) target = $region5
  $region4: #{ml2_forward.1} parent=0 // pred_region
    _
  $region5: #{ml2_forward.1} parent=0 // pred_fallthru
    _
  // Predicated region
  $region6: #{ml2_forward.1} parent=0 // pred_check
    _
  $region7: #{ml2_forward.1} parent=0 // pred_check_branch
    %13 = sbr.rel (0) target = $region9
  $region8: #{ml2_forward.1} parent=0 // pred_region
    _
  $region9: #{ml2_forward.1} parent=0 // pred_fallthru
    _
  // Predicated region
  $region10: #{ml2_forward.1} parent=0 // pred_check
    _
  $region11: #{ml2_forward.1} parent=0 // pred_check_branch
    %15 = sbr.rel (0) target = $region13
  $region12: #{ml2_forward.1} parent=0 // pred_region
    _
  $region13: #{ml2_forward.1} parent=0 // pred_fallthru
    _
  // Predicated region
  $region14: #{ml2_forward.1} parent=0 // pred_check
    _
  $region15: #{ml2_forward.1} parent=0 // pred_check_branch
    %17 = sbr.rel (0) target = $region17
  $region16: #{ml2_forward.1} parent=0 // pred_region
    _
  $region17: #{ml2_forward.1} parent=0 // pred_fallthru
    _
  // Predicated region
  $region18: #{ml2_forward.1} parent=0 // pred_check
    _
  $region19: #{ml2_forward.1} parent=0 // pred_check_branch
    %19 = sbr.rel (0) target = $region21
  $region20: #{ml2_forward.1} parent=0 // pred_region
    _
  $region21: #{ml2_forward.1} parent=0 // pred_fallthru
    _
  %v20 = vld [vmem:[%s4] sm:$0x7]
  %v21 = vlaneseq
  %v22 = vshrl.u32 %v21, 7
  %v23 = vadd.s32 %v22, 8
  %v24 = vlaneseq
  %v25 = vshrl.u32 %v24, 7
  %v26 = vsub.s32 0, %v25
  %v27 = vrot.slane %v20, %v26
  %vm28 = vcmp.eq.s32.totalorder %v22, %v27
  %vm29 = vcmp.eq.s32.totalorder %v23, %v27
  %v30 = vsel %vm28, 1, 0
  %v31 = vsel %vm29, 1, 0
  %v32 = vcvt.s32.f32 %v30
  %v33 = vcvt.s32.f32 %v31
  %v34 = vlaneseq
  %v35 = vshrl.u32 %v34, 7
  %v36 = vsub.s32 1, %v35
  %v37 = vrot.slane %v20, %v36
  %vm38 = vcmp.eq.s32.totalorder %v22, %v37
  %vm39 = vcmp.eq.s32.totalorder %v23, %v37
  %v40 = vsel %vm38, 1, 0
  %v41 = vsel %vm39, 1, 0
  %v42 = vcvt.s32.f32 %v40
  %v43 = vcvt.s32.f32 %v41
  %v44 = vlaneseq
  %v45 = vshrl.u32 %v44, 7
  %v46 = vsub.s32 2, %v45
  %v47 = vrot.slane %v20, %v46
  %vm48 = vcmp.eq.s32.totalorder %v22, %v47
  %vm49 = vcmp.eq.s32.totalorder %v23, %v47
  %v50 = vsel %vm48, 1, 0
  %v51 = vsel %vm49, 1, 0
  %v52 = vcvt.s32.f32 %v50
  %v53 = vcvt.s32.f32 %v51
  %v54 = vld [vmem:[%s0] sm:$0xff]
  %v55 = vld [vmem:[%s0 + $0x8] sm:$0xff]
  %v56 = vld [vmem:[%s0 + $0x10] sm:$0xff]
  %v57 = vld [vmem:[%s0 + $0x18] sm:$0xff]
  %v58 = vld [vmem:[%s0 + $0x20] sm:$0xff]
  %v59 = vld [vmem:[%s0 + $0x28] sm:$0xff]
  %v60 = vld [vmem:[%s0 + $0x30] sm:$0xff]
  %v61 = vld [vmem:[%s0 + $0x38] sm:$0xff]
  %vm62 = vcmask 130048
  %v64 = vsel %vm62, %v54, 0
  %v67 = vsel %vm62, %v55, 0
  %v70 = vsel %vm62, %v56, 0
  %v73 = vsel %vm62, %v57, 0
  %v76 = vsel %vm62, %v58, 0
  %v79 = vsel %vm62, %v59, 0
  %v82 = vsel %vm62, %v60, 0
  %v85 = vsel %vm62, %v61, 0
  %87 = vmatprep.subr.mxu0 0.0
  %88 = vmatpush1.msra.mxu0 %v32
  %89 = vmatprep.subr.mxu0 0.0
  %90 = vmatpush1.msra.mxu0 %v33
  %91 = vmatprep.subr.mxu0 0.0
  %92 = vmatpush1.msra.mxu0 0.0
  %93 = vmatprep.subr.mxu0 0.0
  %94 = vmatpush1.msra.mxu0 0.0
  %95 = vmatprep.subr.mxu0 0.0
  %96 = vmatpush1.msra.mxu0 0.0
  %97 = vmatprep.subr.mxu0 0.0
  %98 = vmatpush1.msra.mxu0 0.0
  %99 = vmatprep.subr.mxu0 0.0
  %100 = vmatpush1.msra.mxu0 0.0
  %101 = vmatprep.subr.mxu0 0.0
  %102 = vmatpush1.msra.mxu0 0.0
  %103 = vmatprep.subr.mxu0 0.0
  %104 = vmatpush1.msra.mxu0 0.0
  %105 = vmatprep.subr.mxu0 0.0
  %106 = vmatpush1.msra.mxu0 0.0
  %107 = vmatprep.subr.mxu0 0.0
  %108 = vmatpush1.msra.mxu0 0.0
  %109 = vmatprep.subr.mxu0 0.0
  %110 = vmatpush1.msra.mxu0 0.0
  %111 = vmatprep.subr.mxu0 0.0
  %112 = vmatpush1.msra.mxu0 0.0
  %113 = vmatprep.subr.mxu0 0.0
  %114 = vmatpush1.msra.mxu0 0.0
  %115 = vmatprep.subr.mxu0 0.0
  %116 = vmatpush1.msra.mxu0 0.0
  %117 = vmatprep.subr.mxu0 0.0
  %118 = vmatpush1.msra.mxu0 0.0
  %119 = vmatprep.subr.mxu0 0.0
  %120 = vmatpush1.msra.mxu0 0.0
  %121 = vmatprep.subr.mxu0 0.0
  %122 = vmatpush1.msra.mxu0 0.0
  %123 = vmatprep.subr.mxu0 0.0
  %124 = vmatpush1.msra.mxu0 0.0
  %125 = vmatprep.subr.mxu0 0.0
  %126 = vmatpush1.msra.mxu0 0.0
  %127 = vmatprep.subr.mxu0 0.0
  %128 = vmatpush1.msra.mxu0 0.0
  %129 = vmatprep.subr.mxu0 0.0
  %130 = vmatpush1.msra.mxu0 0.0
  %131 = vmatprep.subr.mxu0 0.0
  %132 = vmatpush1.msra.mxu0 0.0
  %133 = vmatprep.subr.mxu0 0.0
  %134 = vmatpush1.msra.mxu0 0.0
  %135 = vmatprep.subr.mxu0 0.0
  %136 = vmatpush1.msra.mxu0 0.0
  %137 = vmatprep.subr.mxu0 0.0
  %138 = vmatpush1.msra.mxu0 0.0
  %139 = vmatprep.subr.mxu0 0.0
  %140 = vmatpush1.msra.mxu0 0.0
  %141 = vmatprep.subr.mxu0 0.0
  %142 = vmatpush1.msra.mxu0 0.0
  %143 = vmatprep.subr.mxu0 0.0
  %144 = vmatpush1.msra.mxu0 0.0
  %145 = vmatprep.subr.mxu0 0.0
  %146 = vmatpush1.msra.mxu0 0.0
  %147 = vmatprep.subr.mxu0 0.0
  %148 = vmatpush1.msra.mxu0 0.0
  %149 = vmatprep.subr.mxu0 0.0
  %150 = vmatpush1.msra.mxu0 0.0
  %151 = vmatprep.mubr.f32.mxu0 0.0
  %152 = vmatmul.mubr.f32.gmra.mrb[0].mxu0 %v64
  %v153 = vpop.f32.mrb[0].mxu0
  %v154 = vadd.f32 0.0, %v153
  %v155 = vpop.f32.mrb[0].mxu0
  %156 = vmatprep.mubr.f32.mxu0 0.0
  %157 = vmatmul.mubr.f32.gmra.mrb[0].mxu0 %v67
  %v158 = vpop.f32.mrb[0].mxu0
  %v159 = vadd.f32 0.0, %v158
  %v160 = vpop.f32.mrb[0].mxu0
  %161 = vmatprep.mubr.f32.mxu0 0.0
  %162 = vmatmul.mubr.f32.gmra.mrb[0].mxu0 %v70
  %v163 = vpop.f32.mrb[0].mxu0
  %v164 = vadd.f32 0.0, %v163
  %v165 = vpop.f32.mrb[0].mxu0
  %166 = vmatprep.mubr.f32.mxu0 0.0
  %167 = vmatmul.mubr.f32.gmra.mrb[0].mxu0 %v73
  %v168 = vpop.f32.mrb[0].mxu0
  %v169 = vadd.f32 0.0, %v168
  %v170 = vpop.f32.mrb[0].mxu0
  %171 = vmatprep.mubr.f32.mxu0 0.0
  %172 = vmatmul.mubr.f32.gmra.mrb[0].mxu0 %v76
  %v173 = vpop.f32.mrb[0].mxu0
  %v174 = vadd.f32 0.0, %v173
  %v175 = vpop.f32.mrb[0].mxu0
  %176 = vmatprep.mubr.f32.mxu0 0.0
  %177 = vmatmul.mubr.f32.gmra.mrb[0].mxu0 %v79
  %v178 = vpop.f32.mrb[0].mxu0
  %v179 = vadd.f32 0.0, %v178
  %v180 = vpop.f32.mrb[0].mxu0
  %181 = vmatprep.mubr.f32.mxu0 0.0
  %182 = vmatmul.mubr.f32.gmra.mrb[0].mxu0 %v82
  %v183 = vpop.f32.mrb[0].mxu0
  %v184 = vadd.f32 0.0, %v183
  %v185 = vpop.f32.mrb[0].mxu0
  %186 = vmatprep.mubr.f32.mxu0 0.0
  %187 = vmatmul.mubr.f32.gmra.mrb[0].mxu0 %v85
  %v188 = vpop.f32.mrb[0].mxu0
  %v189 = vadd.f32 0.0, %v188
  %v190 = vpop.f32.mrb[0].mxu0
  %191 = vdwg.mxu0
  %v192 = vmul.f32 %v154, 0.5
  %v193 = vmul.f32 %v159, 0.5
  %v194 = vmul.f32 %v164, 0.5
  %v195 = vmul.f32 %v169, 0.5
  %v196 = vmul.f32 %v174, 0.5
  %v197 = vmul.f32 %v179, 0.5
  %v198 = vmul.f32 %v184, 0.5
  %v199 = vmul.f32 %v189, 0.5
  %v200 = vtanh.pop %v192
  %v201 = vtanh.pop %v193
  %v202 = vtanh.pop %v194
  %v203 = vtanh.pop %v195
  %v204 = vtanh.pop %v196
  %v205 = vtanh.pop %v197
  %v206 = vtanh.pop %v198
  %v207 = vtanh.pop %v199
  %v208 = vadd.f32 %v200, 1.0
  %v209 = vadd.f32 %v201, 1.0
  %v210 = vadd.f32 %v202, 1.0
  %v211 = vadd.f32 %v203, 1.0
  %v212 = vadd.f32 %v204, 1.0
  %v213 = vadd.f32 %v205, 1.0
  %v214 = vadd.f32 %v206, 1.0
  %v215 = vadd.f32 %v207, 1.0
  %v216 = vmul.f32 %v208, 0.5
  %v217 = vmul.f32 %v209, 0.5
  %v218 = vmul.f32 %v210, 0.5
  %v219 = vmul.f32 %v211, 0.5
  %v220 = vmul.f32 %v212, 0.5
  %v221 = vmul.f32 %v213, 0.5
  %v222 = vmul.f32 %v214, 0.5
  %v223 = vmul.f32 %v215, 0.5
  %v224 = vld [vmem:[%s1] sm:$0xff]
  %v225 = vld [vmem:[%s1 + $0x8] sm:$0xff]
  %v226 = vld [vmem:[%s1 + $0x10] sm:$0xff]
  %v227 = vld [vmem:[%s1 + $0x18] sm:$0xff]
  %v228 = vld [vmem:[%s1 + $0x20] sm:$0xff]
  %v229 = vld [vmem:[%s1 + $0x28] sm:$0xff]
  %v230 = vld [vmem:[%s1 + $0x30] sm:$0xff]
  %v231 = vld [vmem:[%s1 + $0x38] sm:$0xff]
  %v233 = vsel %vm62, %v224, 0
  %v236 = vsel %vm62, %v225, 0
  %v239 = vsel %vm62, %v226, 0
  %v242 = vsel %vm62, %v227, 0
  %v245 = vsel %vm62, %v228, 0
  %v248 = vsel %vm62, %v229, 0
  %v251 = vsel %vm62, %v230, 0
  %v254 = vsel %vm62, %v231, 0
  %256 = vmatprep.subr.mxu0 0.0
  %257 = vmatpush1.msra.mxu0 %v42
  %258 = vmatprep.subr.mxu0 0.0
  %259 = vmatpush1.msra.mxu0 %v43
  %260 = vmatprep.subr.mxu0 0.0
  %261 = vmatpush1.msra.mxu0 0.0
  %262 = vmatprep.subr.mxu0 0.0
  %263 = vmatpush1.msra.mxu0 0.0
  %264 = vmatprep.subr.mxu0 0.0
  %265 = vmatpush1.msra.mxu0 0.0
  %266 = vmatprep.subr.mxu0 0.0
  %267 = vmatpush1.msra.mxu0 0.0
  %268 = vmatprep.subr.mxu0 0.0
  %269 = vmatpush1.msra.mxu0 0.0
  %270 = vmatprep.subr.mxu0 0.0
  %271 = vmatpush1.msra.mxu0 0.0
  %272 = vmatprep.subr.mxu0 0.0
  %273 = vmatpush1.msra.mxu0 0.0
  %274 = vmatprep.subr.mxu0 0.0
  %275 = vmatpush1.msra.mxu0 0.0
  %276 = vmatprep.subr.mxu0 0.0
  %277 = vmatpush1.msra.mxu0 0.0
  %278 = vmatprep.subr.mxu0 0.0
  %279 = vmatpush1.msra.mxu0 0.0
  %280 = vmatprep.subr.mxu0 0.0
  %281 = vmatpush1.msra.mxu0 0.0
  %282 = vmatprep.subr.mxu0 0.0
  %283 = vmatpush1.msra.mxu0 0.0
  %284 = vmatprep.subr.mxu0 0.0
  %285 = vmatpush1.msra.mxu0 0.0
  %286 = vmatprep.subr.mxu0 0.0
  %287 = vmatpush1.msra.mxu0 0.0
  %288 = vmatprep.subr.mxu0 0.0
  %289 = vmatpush1.msra.mxu0 0.0
  %290 = vmatprep.subr.mxu0 0.0
  %291 = vmatpush1.msra.mxu0 0.0
  %292 = vmatprep.subr.mxu0 0.0
  %293 = vmatpush1.msra.mxu0 0.0
  %294 = vmatprep.subr.mxu0 0.0
  %295 = vmatpush1.msra.mxu0 0.0
  %296 = vmatprep.subr.mxu0 0.0
  %297 = vmatpush1.msra.mxu0 0.0
  %298 = vmatprep.subr.mxu0 0.0
  %299 = vmatpush1.msra.mxu0 0.0
  %300 = vmatprep.subr.mxu0 0.0
  %301 = vmatpush1.msra.mxu0 0.0
  %302 = vmatprep.subr.mxu0 0.0
  %303 = vmatpush1.msra.mxu0 0.0
  %304 = vmatprep.subr.mxu0 0.0
  %305 = vmatpush1.msra.mxu0 0.0
  %306 = vmatprep.subr.mxu0 0.0
  %307 = vmatpush1.msra.mxu0 0.0
  %308 = vmatprep.subr.mxu0 0.0
  %309 = vmatpush1.msra.mxu0 0.0
  %310 = vmatprep.subr.mxu0 0.0
  %311 = vmatpush1.msra.mxu0 0.0
  %312 = vmatprep.subr.mxu0 0.0
  %313 = vmatpush1.msra.mxu0 0.0
  %314 = vmatprep.subr.mxu0 0.0
  %315 = vmatpush1.msra.mxu0 0.0
  %316 = vmatprep.subr.mxu0 0.0
  %317 = vmatpush1.msra.mxu0 0.0
  %318 = vmatprep.subr.mxu0 0.0
  %319 = vmatpush1.msra.mxu0 0.0
  %320 = vmatprep.mubr.f32.mxu0 0.0
  %321 = vmatmul.mubr.f32.gmra.mrb[0].mxu0 %v233
  %v322 = vpop.f32.mrb[0].mxu0
  %v323 = vadd.f32 0.0, %v322
  %v324 = vpop.f32.mrb[0].mxu0
  %325 = vmatprep.mubr.f32.mxu0 0.0
  %326 = vmatmul.mubr.f32.gmra.mrb[0].mxu0 %v236
  %v327 = vpop.f32.mrb[0].mxu0
  %v328 = vadd.f32 0.0, %v327
  %v329 = vpop.f32.mrb[0].mxu0
  %330 = vmatprep.mubr.f32.mxu0 0.0
  %331 = vmatmul.mubr.f32.gmra.mrb[0].mxu0 %v239
  %v332 = vpop.f32.mrb[0].mxu0
  %v333 = vadd.f32 0.0, %v332
  %v334 = vpop.f32.mrb[0].mxu0
  %335 = vmatprep.mubr.f32.mxu0 0.0
  %336 = vmatmul.mubr.f32.gmra.mrb[0].mxu0 %v242
  %v337 = vpop.f32.mrb[0].mxu0
  %v338 = vadd.f32 0.0, %v337
  %v339 = vpop.f32.mrb[0].mxu0
  %340 = vmatprep.mubr.f32.mxu0 0.0
  %341 = vmatmul.mubr.f32.gmra.mrb[0].mxu0 %v245
  %v342 = vpop.f32.mrb[0].mxu0
  %v343 = vadd.f32 0.0, %v342
  %v344 = vpop.f32.mrb[0].mxu0
  %345 = vmatprep.mubr.f32.mxu0 0.0
  %346 = vmatmul.mubr.f32.gmra.mrb[0].mxu0 %v248
  %v347 = vpop.f32.mrb[0].mxu0
  %v348 = vadd.f32 0.0, %v347
  %v349 = vpop.f32.mrb[0].mxu0
  %350 = vmatprep.mubr.f32.mxu0 0.0
  %351 = vmatmul.mubr.f32.gmra.mrb[0].mxu0 %v251
  %v352 = vpop.f32.mrb[0].mxu0
  %v353 = vadd.f32 0.0, %v352
  %v354 = vpop.f32.mrb[0].mxu0
  %355 = vmatprep.mubr.f32.mxu0 0.0
  %356 = vmatmul.mubr.f32.gmra.mrb[0].mxu0 %v254
  %v357 = vpop.f32.mrb[0].mxu0
  %v358 = vadd.f32 0.0, %v357
  %v359 = vpop.f32.mrb[0].mxu0
  %360 = vdwg.mxu0
  %v361 = vld [vmem:[%s3] sm:$0xff]
  %v362 = vmul.f32 %v323, %v216
  %v363 = vmul.f32 %v328, %v217
  %v364 = vmul.f32 %v333, %v218
  %v365 = vmul.f32 %v338, %v219
  %v366 = vmul.f32 %v343, %v220
  %v367 = vmul.f32 %v348, %v221
  %v368 = vmul.f32 %v353, %v222
  %v369 = vmul.f32 %v358, %v223
  %vm370 = vcmask 523264
  %v372 = vsel %vm370, %v361, 0
  %374 = vmatprep.subr.mxu0 0.0
  %375 = vmatpush1.msra.mxu0 %v362
  %376 = vmatprep.subr.mxu0 0.0
  %377 = vmatpush1.msra.mxu0 %v363
  %378 = vmatprep.subr.mxu0 0.0
  %379 = vmatpush1.msra.mxu0 %v364
  %380 = vmatprep.subr.mxu0 0.0
  %381 = vmatpush1.msra.mxu0 %v365
  %382 = vmatprep.subr.mxu0 0.0
  %383 = vmatpush1.msra.mxu0 %v366
  %384 = vmatprep.subr.mxu0 0.0
  %385 = vmatpush1.msra.mxu0 %v367
  %386 = vmatprep.subr.mxu0 0.0
  %387 = vmatpush1.msra.mxu0 %v368
  %388 = vmatprep.subr.mxu0 0.0
  %389 = vmatpush1.msra.mxu0 %v369
  %390 = vmatprep.subr.mxu0 0.0
  %391 = vmatpush1.msra.mxu0 0.0
  %392 = vmatprep.subr.mxu0 0.0
  %393 = vmatpush1.msra.mxu0 0.0
  %394 = vmatprep.subr.mxu0 0.0
  %395 = vmatpush1.msra.mxu0 0.0
  %396 = vmatprep.subr.mxu0 0.0
  %397 = vmatpush1.msra.mxu0 0.0
  %398 = vmatprep.subr.mxu0 0.0
  %399 = vmatpush1.msra.mxu0 0.0
  %400 = vmatprep.subr.mxu0 0.0
  %401 = vmatpush1.msra.mxu0 0.0
  %402 = vmatprep.subr.mxu0 0.0
  %403 = vmatpush1.msra.mxu0 0.0
  %404 = vmatprep.subr.mxu0 0.0
  %405 = vmatpush1.msra.mxu0 0.0
  %406 = vmatprep.subr.mxu0 0.0
  %407 = vmatpush1.msra.mxu0 0.0
  %408 = vmatprep.subr.mxu0 0.0
  %409 = vmatpush1.msra.mxu0 0.0
  %410 = vmatprep.subr.mxu0 0.0
  %411 = vmatpush1.msra.mxu0 0.0
  %412 = vmatprep.subr.mxu0 0.0
  %413 = vmatpush1.msra.mxu0 0.0
  %414 = vmatprep.subr.mxu0 0.0
  %415 = vmatpush1.msra.mxu0 0.0
  %416 = vmatprep.subr.mxu0 0.0
  %417 = vmatpush1.msra.mxu0 0.0
  %418 = vmatprep.subr.mxu0 0.0
  %419 = vmatpush1.msra.mxu0 0.0
  %420 = vmatprep.subr.mxu0 0.0
  %421 = vmatpush1.msra.mxu0 0.0
  %422 = vmatprep.subr.mxu0 0.0
  %423 = vmatpush1.msra.mxu0 0.0
  %424 = vmatprep.subr.mxu0 0.0
  %425 = vmatpush1.msra.mxu0 0.0
  %426 = vmatprep.subr.mxu0 0.0
  %427 = vmatpush1.msra.mxu0 0.0
  %428 = vmatprep.subr.mxu0 0.0
  %429 = vmatpush1.msra.mxu0 0.0
  %430 = vmatprep.subr.mxu0 0.0
  %431 = vmatpush1.msra.mxu0 0.0
  %432 = vmatprep.subr.mxu0 0.0
  %433 = vmatpush1.msra.mxu0 0.0
  %434 = vmatprep.subr.mxu0 0.0
  %435 = vmatpush1.msra.mxu0 0.0
  %436 = vmatprep.subr.mxu0 0.0
  %437 = vmatpush1.msra.mxu0 0.0
  %438 = vmatprep.mubr.f32.mxu0 0.0
  %439 = vmatmul.mubr.f32.gmra.mrb[0].mxu0 %v372
  %v440 = vpop.f32.mrb[0].mxu0
  %v441 = vadd.f32 0.0, %v440
  %v442 = vpop.f32.mrb[0].mxu0
  %443 = vdwg.mxu0
  %v444 = vmul.f32 %v441, 0.5
  %v445 = vtanh.pop %v444
  %v446 = vadd.f32 %v445, 1.0
  %v447 = vmul.f32 %v446, 0.5
  %v448 = vld [vmem:[%s2] sm:$0xff]
  %v450 = vsel %vm62, %v448, 0
  %452 = vmatprep.subr.mxu0 0.0
  %453 = vmatpush1.msra.mxu0 %v52
  %454 = vmatprep.subr.mxu0 0.0
  %455 = vmatpush1.msra.mxu0 %v53
  %456 = vmatprep.subr.mxu0 0.0
  %457 = vmatpush1.msra.mxu0 0.0
  %458 = vmatprep.subr.mxu0 0.0
  %459 = vmatpush1.msra.mxu0 0.0
  %460 = vmatprep.subr.mxu0 0.0
  %461 = vmatpush1.msra.mxu0 0.0
  %462 = vmatprep.subr.mxu0 0.0
  %463 = vmatpush1.msra.mxu0 0.0
  %464 = vmatprep.subr.mxu0 0.0
  %465 = vmatpush1.msra.mxu0 0.0
  %466 = vmatprep.subr.mxu0 0.0
  %467 = vmatpush1.msra.mxu0 0.0
  %468 = vmatprep.subr.mxu0 0.0
  %469 = vmatpush1.msra.mxu0 0.0
  %470 = vmatprep.subr.mxu0 0.0
  %471 = vmatpush1.msra.mxu0 0.0
  %472 = vmatprep.subr.mxu0 0.0
  %473 = vmatpush1.msra.mxu0 0.0
  %474 = vmatprep.subr.mxu0 0.0
  %475 = vmatpush1.msra.mxu0 0.0
  %476 = vmatprep.subr.mxu0 0.0
  %477 = vmatpush1.msra.mxu0 0.0
  %478 = vmatprep.subr.mxu0 0.0
  %479 = vmatpush1.msra.mxu0 0.0
  %480 = vmatprep.subr.mxu0 0.0
  %481 = vmatpush1.msra.mxu0 0.0
  %482 = vmatprep.subr.mxu0 0.0
  %483 = vmatpush1.msra.mxu0 0.0
  %484 = vmatprep.subr.mxu0 0.0
  %485 = vmatpush1.msra.mxu0 0.0
  %486 = vmatprep.subr.mxu0 0.0
  %487 = vmatpush1.msra.mxu0 0.0
  %488 = vmatprep.subr.mxu0 0.0
  %489 = vmatpush1.msra.mxu0 0.0
  %490 = vmatprep.subr.mxu0 0.0
  %491 = vmatpush1.msra.mxu0 0.0
  %492 = vmatprep.subr.mxu0 0.0
  %493 = vmatpush1.msra.mxu0 0.0
  %494 = vmatprep.subr.mxu0 0.0
  %495 = vmatpush1.msra.mxu0 0.0
  %496 = vmatprep.subr.mxu0 0.0
  %497 = vmatpush1.msra.mxu0 0.0
  %498 = vmatprep.subr.mxu0 0.0
  %499 = vmatpush1.msra.mxu0 0.0
  %500 = vmatprep.subr.mxu0 0.0
  %501 = vmatpush1.msra.mxu0 0.0
  %502 = vmatprep.subr.mxu0 0.0
  %503 = vmatpush1.msra.mxu0 0.0
  %504 = vmatprep.subr.mxu0 0.0
  %505 = vmatpush1.msra.mxu0 0.0
  %506 = vmatprep.subr.mxu0 0.0
  %507 = vmatpush1.msra.mxu0 0.0
  %508 = vmatprep.subr.mxu0 0.0
  %509 = vmatpush1.msra.mxu0 0.0
  %510 = vmatprep.subr.mxu0 0.0
  %511 = vmatpush1.msra.mxu0 0.0
  %512 = vmatprep.subr.mxu0 0.0
  %513 = vmatpush1.msra.mxu0 0.0
  %514 = vmatprep.subr.mxu0 0.0
  %515 = vmatpush1.msra.mxu0 0.0
  %516 = vmatprep.mubr.f32.mxu0 0.0
  %517 = vmatmul.mubr.f32.gmra.mrb[0].mxu0 %v450
  %v518 = vpop.f32.mrb[0].mxu0
  %v519 = vadd.f32 0.0, %v518
  %v520 = vpop.f32.mrb[0].mxu0
  %521 = vdwg.mxu0
  %v522 = vmul.f32 %v519, %v447
  %v523 = vrot.slane %v522, 4
  %v524 = vadd.f32 %v522, %v523
  %v525 = vrot.slane %v524, 2
  %v526 = vadd.f32 %v524, %v525
  %v527 = vrot.slane %v526, 1
  %v528 = vadd.f32 %v526, %v527
  %529 = vst [vmem:[%s5] sm:$0x1] %v528
  // Predicated region
  $region22: #{ml2_forward.1} parent=0 // pred_check
    _
  $region23: #{ml2_forward.1} parent=0 // pred_check_branch
    %531 = sbr.rel (0) target = $region25
  $region24: #{ml2_forward.1} parent=0 // pred_region
    _
  $region25: #{ml2_forward.1} parent=0 // pred_fallthru
    _
  // Predicated region
  $region26: #{ml2_forward.1} parent=0 // pred_check
    _
  $region27: #{ml2_forward.1} parent=0 // pred_check_branch
    %533 = sbr.rel (0) target = $region29
  $region28: #{ml2_forward.1} parent=0 // pred_region
    _
  $region29: #{ml2_forward.1} parent=0 // pred_fallthru
    _

</llo_original>
